<compile_context>
chip_gen: v5e
topology: v5e:2x2
jax: 0.10.0
libtpu: 0.0.40
codegen_flags: <defaults>
</compile_context>

<pallas_src>
import jax
import jax.numpy as jnp
from jax.experimental import pallas as pl
from jax.experimental.pallas import tpu as pltpu

LANE = 128  # TPU lane width


def ensemble_kernel(x_ref, w_ref, b_ref, o_ref):
    # x_ref: (4, TB)  transposed input tile (features on sublanes, batch on lanes)
    # w_ref: (4, 4)   fused weight, y^T = W @ x^T
    # b_ref: (4, 1)   fused bias
    x = x_ref[...]
    w = w_ref[...]
    b = b_ref[...]
    # Unrolled VPU broadcast-FMA: y[r, :] = b[r] + sum_k w[r, k] * x[k, :]
    acc = b + w[:, 0:1] * x[0:1, :]
    acc = acc + w[:, 1:2] * x[1:2, :]
    acc = acc + w[:, 2:3] * x[2:3, :]
    acc = acc + w[:, 3:4] * x[3:4, :]
    o_ref[...] = acc.astype(o_ref.dtype)


def ensemble_forward(x, w1, b1, w2, b2, *, tb=8192):
    """x: (B, 4); w1: (2, 4); b1: (2,); w2: (4, 2); b2: (4,)  (PyTorch layout).

    Returns (B, 4), identical to Linear(4,2) -> Linear(2,4).
    """
    B = x.shape[0]
    dtype = x.dtype

    # ---- algebraic fusion (exact: no nonlinearity between layers) ----------
    # y = (x @ w1.T + b1) @ w2.T + b2  =  x @ (w1.T @ w2.T) + (b1 @ w2.T + b2)
    # In transposed (lane-dense) form: y^T = (w2 @ w1) @ x^T + (w2 @ b1 + b2)[:, None]
    w_eff = (w2 @ w1).astype(jnp.float32)                      # (4, 4)
    b_eff = (w2 @ b1 + b2).astype(jnp.float32).reshape(4, 1)   # (4, 1)

    # ---- lane-dense layout + batch tiling ----------------------------------
    xT = x.astype(jnp.float32).T                               # (4, B)
    # Tile size: multiple of 128 lanes, at most what B needs, at least 128.
    tb = max(LANE, (min(tb, pl.cdiv(B, LANE) * LANE) // LANE) * LANE)
    B_pad = pl.cdiv(B, tb) * tb
    if B_pad != B:
        xT = jnp.pad(xT, ((0, 0), (0, B_pad - B)))
    grid = (B_pad // tb,)

    yT = pl.pallas_call(
        ensemble_kernel,
        out_shape=jax.ShapeDtypeStruct((4, B_pad), jnp.float32),
        grid_spec=pltpu.PrefetchScalarGridSpec(
            num_scalar_prefetch=0,
            grid=grid,
            in_specs=[
                pl.BlockSpec((4, tb), lambda i: (0, i)),   # x^T tile (lane-dense)
                pl.BlockSpec((4, 4), lambda i: (0, 0)),    # fused weight (resident)
                pl.BlockSpec((4, 1), lambda i: (0, 0)),    # fused bias (resident)
            ],
            out_specs=pl.BlockSpec((4, tb), lambda i: (0, i)),
        ),
        compiler_params=pltpu.CompilerParams(
            dimension_semantics=("parallel",)),
    )(xT, w_eff, b_eff)

    return yT[:, :B].T.astype(dtype)


def init_params(key):
    """Deterministic init matching PyTorch nn.Linear default (U[-1/sqrt(fan_in), +])."""
    k1, k2, k3, k4 = jax.random.split(key, 4)
    bound1 = 1.0 / jnp.sqrt(4.0)   # fan_in = 4 for self.input
    bound2 = 1.0 / jnp.sqrt(2.0)   # fan_in = 2 for self.fc
    w1 = jax.random.uniform(k1, (2, 4), jnp.float32, -bound1, bound1)
    b1 = jax.random.uniform(k2, (2,),   jnp.float32, -bound1, bound1)
    w2 = jax.random.uniform(k3, (4, 2), jnp.float32, -bound2, bound2)
    b2 = jax.random.uniform(k4, (4,),   jnp.float32, -bound2, bound2)
    return w1, b1, w2, b2


if __name__ == "__main__":
    key = jax.random.PRNGKey(0)
    kx, kp = jax.random.split(key)

    batch = 8   # small demo batch; kernel pads lanes to 128 internally
    x = jax.random.normal(kx, (batch, 4), dtype=jnp.float32)
    w1, b1, w2, b2 = init_params(kp)

    out = ensemble_forward(x, w1, b1, w2, b2)
    out = jax.block_until_ready(out)

    # reference check in plain JAX (unfused two-linear form)
    ref = (x @ w1.T + b1) @ w2.T + b2
    assert out.shape == (batch, 4)
    assert jnp.allclose(out, ref, atol=1e-5, rtol=1e-5)

    print("KERNEL_OK")
</pallas_src>

<mosaic_0001>
module attributes {stable_mosaic.version = 11 : i64} {
  func.func @ensemble_kernel(%arg0: i32, %arg1: memref<4x128xf32, #tpu.memory_space<vmem>>, %arg2: memref<4x4xf32, #tpu.memory_space<vmem>>, %arg3: memref<4x1xf32, #tpu.memory_space<vmem>>, %arg4: memref<4x128xf32, #tpu.memory_space<vmem>>) attributes {dimension_semantics = [#tpu.dimension_semantics<parallel>], iteration_bounds = array<i64: 1>, scalar_prefetch = 0 : i64, scratch_operands = 0 : i64, tpu.core_type = #tpu.core_type<tc>, window_params = [{transform_indices = @transform_0, window_bounds = array<i64: 4, 128>}, {pipeline_mode = #tpu.pipeline_mode<synchronous>, transform_indices = @transform_1, window_bounds = array<i64: 4, 4>}, {pipeline_mode = #tpu.pipeline_mode<synchronous>, transform_indices = @transform_2, window_bounds = array<i64: 4, 1>}, {transform_indices = @transform_3, window_bounds = array<i64: 4, 128>}]} {
    %c0 = arith.constant 0 : index
    %c0_0 = arith.constant 0 : index
    %0 = vector.load %arg1[%c0, %c0_0] : memref<4x128xf32, #tpu.memory_space<vmem>>, vector<4x128xf32>
    %c0_1 = arith.constant 0 : index
    %c0_2 = arith.constant 0 : index
    %1 = vector.load %arg2[%c0_1, %c0_2] : memref<4x4xf32, #tpu.memory_space<vmem>>, vector<4x4xf32>
    %c0_3 = arith.constant 0 : index
    %c0_4 = arith.constant 0 : index
    %2 = vector.load %arg3[%c0_3, %c0_4] : memref<4x1xf32, #tpu.memory_space<vmem>>, vector<4x1xf32>
    %3 = vector.extract_strided_slice %1 {offsets = [0, 0], sizes = [4, 1], strides = [1, 1]} : vector<4x4xf32> to vector<4x1xf32>
    %4 = vector.extract_strided_slice %0 {offsets = [0, 0], sizes = [1, 128], strides = [1, 1]} : vector<4x128xf32> to vector<1x128xf32>
    %5 = vector.broadcast %3 : vector<4x1xf32> to vector<4x128xf32>
    %6 = vector.broadcast %4 : vector<1x128xf32> to vector<4x128xf32>
    %7 = arith.mulf %5, %6 : vector<4x128xf32>
    %8 = vector.broadcast %2 : vector<4x1xf32> to vector<4x128xf32>
    %9 = arith.addf %8, %7 : vector<4x128xf32>
    %10 = vector.extract_strided_slice %1 {offsets = [0, 1], sizes = [4, 1], strides = [1, 1]} : vector<4x4xf32> to vector<4x1xf32>
    %11 = vector.extract_strided_slice %0 {offsets = [1, 0], sizes = [1, 128], strides = [1, 1]} : vector<4x128xf32> to vector<1x128xf32>
    %12 = vector.broadcast %10 : vector<4x1xf32> to vector<4x128xf32>
    %13 = vector.broadcast %11 : vector<1x128xf32> to vector<4x128xf32>
    %14 = arith.mulf %12, %13 : vector<4x128xf32>
    %15 = arith.addf %9, %14 : vector<4x128xf32>
    %16 = vector.extract_strided_slice %1 {offsets = [0, 2], sizes = [4, 1], strides = [1, 1]} : vector<4x4xf32> to vector<4x1xf32>
    %17 = vector.extract_strided_slice %0 {offsets = [2, 0], sizes = [1, 128], strides = [1, 1]} : vector<4x128xf32> to vector<1x128xf32>
    %18 = vector.broadcast %16 : vector<4x1xf32> to vector<4x128xf32>
    %19 = vector.broadcast %17 : vector<1x128xf32> to vector<4x128xf32>
    %20 = arith.mulf %18, %19 : vector<4x128xf32>
    %21 = arith.addf %15, %20 : vector<4x128xf32>
    %22 = vector.extract_strided_slice %1 {offsets = [0, 3], sizes = [4, 1], strides = [1, 1]} : vector<4x4xf32> to vector<4x1xf32>
    %23 = vector.extract_strided_slice %0 {offsets = [3, 0], sizes = [1, 128], strides = [1, 1]} : vector<4x128xf32> to vector<1x128xf32>
    %24 = vector.broadcast %22 : vector<4x1xf32> to vector<4x128xf32>
    %25 = vector.broadcast %23 : vector<1x128xf32> to vector<4x128xf32>
    %26 = arith.mulf %24, %25 : vector<4x128xf32>
    %27 = arith.addf %21, %26 : vector<4x128xf32>
    %c0_5 = arith.constant 0 : index
    %c0_6 = arith.constant 0 : index
    %28 = vector.load %arg4[%c0_5, %c0_6] : memref<4x128xf32, #tpu.memory_space<vmem>>, vector<4x128xf32>
    tpu.vector_store %arg4[%c0_5, %c0_6], %27 {strides = array<i32>} : memref<4x128xf32, #tpu.memory_space<vmem>>, vector<4x128xf32>,
    return
  }
  func.func @transform_0(%arg0: i32) -> (i32, i32) {
    %c0_i32 = arith.constant 0 : i32
    %c0_i32_0 = arith.constant 0 : i32
    return %c0_i32, %arg0 : i32, i32
  }
  func.func @transform_1(%arg0: i32) -> (i32, i32) {
    %c0_i32 = arith.constant 0 : i32
    %c0_i32_0 = arith.constant 0 : i32
    %c0_i32_1 = arith.constant 0 : i32
    return %c0_i32, %c0_i32_0 : i32, i32
  }
  func.func @transform_2(%arg0: i32) -> (i32, i32) {
    %c0_i32 = arith.constant 0 : i32
    %c0_i32_0 = arith.constant 0 : i32
    %c0_i32_1 = arith.constant 0 : i32
    return %c0_i32, %c0_i32_0 : i32, i32
  }
  func.func @transform_3(%arg0: i32) -> (i32, i32) {
    %c0_i32 = arith.constant 0 : i32
    %c0_i32_0 = arith.constant 0 : i32
    return %c0_i32, %arg0 : i32, i32
  }
}

</mosaic_0001>

<llo_original>
// kernel: tpu_custom_call.1
$region0: #{tpu_custom_call.1}
  #allocation0 [shape = 'u32[]', space=smem, size = 0x4, offset = 0x4, fixed_abs, tag = 'smem constant byte address 0x4 - core index']
  #allocation1 [shape = 'u32[72,128]{1,0:T(1,128)}', space=vmem, size = 0x9000, scoped, tag = 'internal scratch']
  %s0 = inlined_call_operand.vmem [shape: f32[4,128], index: 0, kind: input, shape index: {}]
  %s1 = inlined_call_operand.hbm [shape: f32[4,4], index: 1, kind: input, shape index: {}]
  %s2 = inlined_call_operand.vmem [shape: f32[4,1], index: 2, kind: input, shape index: {}]
  %s3 = inlined_call_operand.hbm [shape: f32[4,128], index: 3, kind: output, shape index: {}]
  %s4 = sld [smem:[#allocation0]]
  $region26: #{tpu_custom_call.1} parent=0
    _
  %s6 = ssub.s32 1, %s4
  %s7 = scalar_select 0, %s6, %s4
  $region1: #{tpu_custom_call.1} parent=0
    #allocation2 [shape = 'u8[2048]{0}', space=vmem, size = 0x800, scoped, tag = 'input window, operand 1, single buffered']
    #allocation3 [shape = 's32[1]{0}', space=sflag, size = 0x4, scoped, tag = 'scoped memory for tpu_custom_call.1']
    #allocation4 [shape = 's32[1]{0}', space=sflag, size = 0x4, scoped, tag = 'scoped memory for tpu_custom_call.1']
    #allocation5 [shape = 'u8[2048]{0}', space=vmem, size = 0x800, scoped, tag = 'output window, operand 0, single buffered']
    %8 = vsyncpa [#allocation3], 0
    %9 = vsyncpa [#allocation4], 0
    // Predicated region
    $region2: #{tpu_custom_call.1} parent=1 // pred_check
      _
    $region3: #{tpu_custom_call.1} parent=1 // pred_check_branch
      %11 = sbr.rel (0) target = $region5
    $region4: #{tpu_custom_call.1} parent=1 // pred_region
      _
    $region5: #{tpu_custom_call.1} parent=1 // pred_fallthru
      _
    // Predicated region
    $region6: #{tpu_custom_call.1} parent=1 // pred_check
      _
    $region7: #{tpu_custom_call.1} parent=1 // pred_check_branch
      %13 = sbr.rel (0) target = $region9
    $region8: #{tpu_custom_call.1} parent=1 // pred_region
      %15 = vsyncadd [#allocation3], 0
      %s17 = sshll.u32 %s1, 4
      %s18 = int_to_ptr.hbm [resolvable:$true] %s17
      %s19 = sshll.u32 [#allocation2], 4
      %s20 = int_to_ptr.vmem [resolvable:$true] %s19
      %22 = dma.hbm_to_vmem [thread:$0]  %s18, 64, %s20, [#allocation3]
    $region9: #{tpu_custom_call.1} parent=1 // pred_fallthru
      _
    // Predicated region
    $region10: #{tpu_custom_call.1} parent=1 // pred_check
      _
    $region11: #{tpu_custom_call.1} parent=1 // pred_check_branch
      %24 = sbr.rel (0) target = $region13
    $region12: #{tpu_custom_call.1} parent=1 // pred_region
      _
    $region13: #{tpu_custom_call.1} parent=1 // pred_fallthru
      _
    // Predicated region
    $region14: #{tpu_custom_call.1} parent=1 // pred_check
      _
    $region15: #{tpu_custom_call.1} parent=1 // pred_check_branch
      %26 = sbr.rel (0) target = $region17
    $region16: #{tpu_custom_call.1} parent=1 // pred_region
      %28 = dma.done [#allocation3], 64
    $region17: #{tpu_custom_call.1} parent=1 // pred_fallthru
      _
    %v29 = vld [vmem:[%s0] sm:$0xf]
    %v30 = vld [vmem:[#allocation2] sm:$0xf]
    %v31 = vld [vmem:[%s2] sm:$0xf]
    %33 = vset.pattern.permute.xlu0 0
    %34 = vperm.xlu0 %33, %v30
    %v35 = vpop.permute.xlu0 %34
    %v37 = vperm.slane %v29, 0
    %v38 = vmul.f32 %v35, %v37
    %40 = vset.pattern.permute.xlu0 0
    %41 = vperm.xlu0 %40, %v31
    %v42 = vpop.permute.xlu0 %41
    %v44 = vadd.f32 %v42, %v38
    %45 = vset.pattern.permute.xlu0 1
    %46 = vperm.xlu0 %45, %v30
    %v47 = vpop.permute.xlu0 %46
    %v49 = vperm.slane %v29, 1
    %v50 = vmul.f32 %v47, %v49
    %v51 = vadd.f32 %v44, %v50
    %52 = vset.pattern.permute.xlu0 2
    %53 = vperm.xlu0 %52, %v30
    %v54 = vpop.permute.xlu0 %53
    %v56 = vperm.slane %v29, 2
    %v57 = vmul.f32 %v54, %v56
    %v58 = vadd.f32 %v51, %v57
    %59 = vset.pattern.permute.xlu0 3
    %60 = vperm.xlu0 %59, %v30
    %v61 = vpop.permute.xlu0 %60
    %v63 = vperm.slane %v29, 3
    %v64 = vmul.f32 %v61, %v63
    %v65 = vadd.f32 %v58, %v64
    %66 = vst [vmem:[#allocation5] sm:$0xf] %v65
    // Predicated region
    $region18: #{tpu_custom_call.1} parent=1 // pred_check
      _
    $region19: #{tpu_custom_call.1} parent=1 // pred_check_branch
      %68 = sbr.rel (0) target = $region21
    $region20: #{tpu_custom_call.1} parent=1 // pred_region
      %70 = vsyncadd [#allocation4], 0
      %s72 = sshll.u32 [#allocation5], 4
      %s73 = int_to_ptr.vmem [resolvable:$true] %s72
      %s74 = sshll.u32 %s3, 4
      %s75 = int_to_ptr.hbm [resolvable:$true] %s74
      %77 = dma.vmem_to_hbm [thread:$0]  %s73, 64, %s75, [#allocation4]
    $region21: #{tpu_custom_call.1} parent=1 // pred_fallthru
      _
    // Predicated region
    $region22: #{tpu_custom_call.1} parent=1 // pred_check
      _
    $region23: #{tpu_custom_call.1} parent=1 // pred_check_branch
      %79 = sbr.rel (0) target = $region25
    $region24: #{tpu_custom_call.1} parent=1 // pred_region
      %81 = dma.done [#allocation4], 64
    $region25: #{tpu_custom_call.1} parent=1 // pred_fallthru
      _
    %82 = vsyncpa [#allocation3], 1
    %83 = vsyncpa [#allocation4], 1

</llo_original>
